<compile_context>
chip_gen: v6e
topology: v6e:2x2x1
jax: 0.10.0
libtpu: 0.0.40
codegen_flags: <defaults>
</compile_context>

<pallas_src>
import jax
import jax.numpy as jnp
from jax import lax
from jax.experimental import pallas as pl
from jax.experimental.pallas import tpu as pltpu


def _round_up(n, m):
    return ((n + m - 1) // m) * m


def cbow_kernel(idx_ref, emb_ref, out_ref, acc_ref):
    """One (batch-tile, vocab-tile) grid step.

    idx_ref: VMEM [TB, C]  int32 token ids for this batch tile
    emb_ref: VMEM [TV, Ep] embedding-table tile (rows k*TV .. k*TV+TV-1), bf16
    out_ref: VMEM [TB, Ep] f32 output tile (written on the last vocab step)
    acc_ref: VMEM [TB, Ep] f32 accumulator (resident across the vocab axis)
    """
    k = pl.program_id(1)
    TB, C = idx_ref.shape
    TV = emb_ref.shape[0]
    inv_c = jnp.float32(1.0 / C)

    @pl.when(k == 0)
    def _():
        acc_ref[...] = jnp.zeros_like(acc_ref)

    ids = idx_ref[...]                                        # [TB, C] int32 (one load)
    # Vocab ids covered by this table tile, laid out along lanes.
    vocab = lax.broadcasted_iota(jnp.int32, (TB, TV), 1) + k * TV

    # counts[b, v] = #{c : ids[b, c] == v} over this vocab window.
    # int32 accumulation of the bool compares; C is a small static constant
    # -> static unroll, pure VPU work, no per-step f32 converts.
    counts = jnp.zeros((TB, TV), jnp.int32)
    for c in range(C):
        counts = counts + (vocab == ids[:, c:c + 1]).astype(jnp.int32)

    # Exact small integers -> bf16 is lossless; bf16 x bf16 hits the native MXU
    # path (f32 x f32 is emulated on v5e/v6e/v7x). Accumulate in f32.
    counts_mx = counts.astype(emb_ref.dtype)
    acc_ref[...] += jnp.dot(counts_mx, emb_ref[...],
                            preferred_element_type=jnp.float32)

    # Apply the 1/C mean scale once, on the narrow [TB, Ep] f32 accumulator.
    @pl.when(k == pl.num_programs(1) - 1)
    def _():
        out_ref[...] = (acc_ref[...] * inv_c).astype(out_ref.dtype)


def cbow_forward(x, emb_table, *, use_bf16_table=True):
    """x: [B, C] integer token ids; emb_table: [V, E] float32.  Returns [B, E] float32."""
    B, C = x.shape
    V, E = emb_table.shape
    table_dtype = jnp.bfloat16 if use_bf16_table else jnp.float32
    tbl_bytes = jnp.dtype(table_dtype).itemsize

    Ep = _round_up(E, 128)                     # lane-dense table columns / output
    TB = min(256, _round_up(B, 8))             # batch tile (sublane aligned, amortizes step overhead)
    Bp = _round_up(B, TB)
    TV = min(1024, _round_up(V, 128))          # vocab (contraction) tile, MXU-K friendly
    Vp = _round_up(V, TV)
    n_b, n_v = Bp // TB, Vp // TV

    # Padded batch rows use token 0 and are sliced off; padded vocab rows match no
    # token id (zero count) and are zero in the table, so results are unchanged.
    x_p = jnp.pad(x.astype(jnp.int32), ((0, Bp - B), (0, 0)))
    emb_p = jnp.pad(emb_table.astype(table_dtype), ((0, Vp - V), (0, Ep - E)))

    # Generation-aware VMEM limit (v7x: 64 MiB/TC; v5e/v6e: 128 MiB).
    try:
        vmem_cap = pltpu.get_tpu_info().vmem_capacity_bytes
    except Exception:
        vmem_cap = 64 * 1024 * 1024
    vmem_limit = int(min(vmem_cap * 3 // 4, 100 * 1024 * 1024))

    if n_v == 1:
        # Constant-index table block is fetched once and never swapped:
        # don't double-buffer it (halves its VMEM footprint).
        emb_spec = pl.BlockSpec((TV, Ep), lambda i, k: (0, 0),
                                pipeline_mode=pl.Buffered(1))
    else:
        emb_spec = pl.BlockSpec((TV, Ep), lambda i, k: (k, 0))

    cost = pl.CostEstimate(
        flops=2 * Bp * Vp * Ep + Bp * C * Vp,
        transcendentals=0,
        bytes_accessed=n_b * Vp * Ep * tbl_bytes + Bp * C * 4 + Bp * Ep * 4,
    )

    out = pl.pallas_call(
        cbow_kernel,
        out_shape=jax.ShapeDtypeStruct((Bp, Ep), jnp.float32),
        grid_spec=pltpu.PrefetchScalarGridSpec(
            num_scalar_prefetch=0,
            grid=(n_b, n_v),                                   # batch outer, vocab reduction innermost
            in_specs=[
                pl.BlockSpec((TB, C), lambda i, k: (i, 0)),    # ids: tiled over batch
                emb_spec,                                      # table: tiled over vocab
            ],
            out_specs=pl.BlockSpec((TB, Ep), lambda i, k: (i, 0)),
            scratch_shapes=[pltpu.VMEM((TB, Ep), jnp.float32)],
        ),
        compiler_params=pltpu.CompilerParams(
            dimension_semantics=("parallel", "arbitrary"),     # megacore-shard batch tiles (v7x)
            vmem_limit_bytes=vmem_limit,
        ),
        cost_estimate=cost,
    )(x_p, emb_p)

    return out[:B, :E]


if __name__ == "__main__":
    # Module shapes: CBOW(v_dim, emb_dim) — small synthetic sizes.
    V, E = 64, 32          # vocab size, embedding dim
    B, C = 8, 4            # batch, context-window length

    key = jax.random.PRNGKey(0)
    k_emb, k_idx = jax.random.split(key)

    # embeddings.weight.data.normal_(0, 0.1)
    emb_table = (0.1 * jax.random.normal(k_emb, (V, E))).astype(jnp.float32)
    x = jax.random.randint(k_idx, (B, C), 0, V, dtype=jnp.int32)

    out = cbow_forward(x, emb_table)
    out = jax.block_until_ready(out)

    # Pure-JAX reference of the forward semantics, using the same bf16 weight
    # storage the kernel uses (accumulation in f32).
    emb_stored = emb_table.astype(jnp.bfloat16).astype(jnp.float32)
    ref = jnp.take(emb_stored, x, axis=0).mean(axis=1)
    assert out.shape == (B, E)
    assert jnp.allclose(out, ref, atol=1e-4, rtol=1e-4), "mismatch vs reference"

    print("KERNEL_OK")
</pallas_src>

<mosaic_0001>
module attributes {stable_mosaic.version = 11 : i64} {
  func.func @cbow_kernel(%arg0: i32, %arg1: i32, %arg2: memref<8x4xi32, #tpu.memory_space<vmem>>, %arg3: memref<128x128xbf16, #tpu.memory_space<vmem>>, %arg4: memref<8x128xf32, #tpu.memory_space<vmem>>, %arg5: memref<8x128xf32, #tpu.memory_space<vmem>>) attributes {dimension_semantics = [#tpu.dimension_semantics<parallel>, #tpu.dimension_semantics<arbitrary>], iteration_bounds = array<i64: 1, 1>, scalar_prefetch = 0 : i64, scratch_operands = 1 : i64, tpu.core_type = #tpu.core_type<tc>, window_params = [{transform_indices = @transform_0, window_bounds = array<i64: 8, 4>}, {pipeline_mode = #tpu.pipeline_mode<synchronous>, transform_indices = @transform_1, window_bounds = array<i64: 128, 128>}, {transform_indices = @transform_2, window_bounds = array<i64: 8, 128>}]} {
    %c0_i32 = arith.constant 0 : i32
    %0 = arith.cmpi eq, %arg1, %c0_i32 : i32
    %1 = arith.extui %0 : i1 to i32
    %c0_i32_0 = arith.constant 0 : i32
    %2 = arith.cmpi ne, %1, %c0_i32_0 : i32
    scf.if %2 {
      %cst_12 = arith.constant 0.000000e+00 : f32
      %38 = vector.broadcast %cst_12 : f32 to vector<8x128xf32>
      %c0_13 = arith.constant 0 : index
      %c0_14 = arith.constant 0 : index
      %39 = vector.load %arg5[%c0_13, %c0_14] : memref<8x128xf32, #tpu.memory_space<vmem>>, vector<8x128xf32>
      tpu.vector_store %arg5[%c0_13, %c0_14], %38 {strides = array<i32>} : memref<8x128xf32, #tpu.memory_space<vmem>>, vector<8x128xf32>,
    } else {
    }
    %c0 = arith.constant 0 : index
    %c0_1 = arith.constant 0 : index
    %3 = vector.load %arg2[%c0, %c0_1] : memref<8x4xi32, #tpu.memory_space<vmem>>, vector<8x4xi32>
    %4 = tpu.iota {dimensions = array<i32: 1>} : vector<8x128xi32>
    %c128_i32 = arith.constant 128 : i32
    %5 = arith.muli %arg1, %c128_i32 : i32
    %6 = vector.broadcast %5 : i32 to vector<8x128xi32>
    %7 = arith.addi %4, %6 : vector<8x128xi32>
    %c0_i32_2 = arith.constant 0 : i32
    %8 = vector.broadcast %c0_i32_2 : i32 to vector<8x128xi32>
    %9 = vector.extract_strided_slice %3 {offsets = [0, 0], sizes = [8, 1], strides = [1, 1]} : vector<8x4xi32> to vector<8x1xi32>
    %10 = vector.broadcast %9 : vector<8x1xi32> to vector<8x128xi32>
    %11 = arith.cmpi eq, %7, %10 : vector<8x128xi32>
    %12 = arith.extui %11 : vector<8x128xi1> to vector<8x128xi32>
    %13 = arith.addi %8, %12 : vector<8x128xi32>
    %14 = vector.extract_strided_slice %3 {offsets = [0, 1], sizes = [8, 1], strides = [1, 1]} : vector<8x4xi32> to vector<8x1xi32>
    %15 = vector.broadcast %14 : vector<8x1xi32> to vector<8x128xi32>
    %16 = arith.cmpi eq, %7, %15 : vector<8x128xi32>
    %17 = arith.extui %16 : vector<8x128xi1> to vector<8x128xi32>
    %18 = arith.addi %13, %17 : vector<8x128xi32>
    %19 = vector.extract_strided_slice %3 {offsets = [0, 2], sizes = [8, 1], strides = [1, 1]} : vector<8x4xi32> to vector<8x1xi32>
    %20 = vector.broadcast %19 : vector<8x1xi32> to vector<8x128xi32>
    %21 = arith.cmpi eq, %7, %20 : vector<8x128xi32>
    %22 = arith.extui %21 : vector<8x128xi1> to vector<8x128xi32>
    %23 = arith.addi %18, %22 : vector<8x128xi32>
    %24 = vector.extract_strided_slice %3 {offsets = [0, 3], sizes = [8, 1], strides = [1, 1]} : vector<8x4xi32> to vector<8x1xi32>
    %25 = vector.broadcast %24 : vector<8x1xi32> to vector<8x128xi32>
    %26 = arith.cmpi eq, %7, %25 : vector<8x128xi32>
    %27 = arith.extui %26 : vector<8x128xi1> to vector<8x128xi32>
    %28 = arith.addi %23, %27 : vector<8x128xi32>
    %29 = arith.sitofp %28 : vector<8x128xi32> to vector<8x128xbf16>
    %c0_3 = arith.constant 0 : index
    %c0_4 = arith.constant 0 : index
    %30 = vector.load %arg5[%c0_3, %c0_4] : memref<8x128xf32, #tpu.memory_space<vmem>>, vector<8x128xf32>
    %c0_5 = arith.constant 0 : index
    %c0_6 = arith.constant 0 : index
    %31 = vector.load %arg3[%c0_5, %c0_6] : memref<128x128xbf16, #tpu.memory_space<vmem>>, vector<128x128xbf16>
    %cst = arith.constant dense<0.000000e+00> : vector<8x128xf32>
    %32 = tpu.matmul %29, %31, %cst {dimension_numbers = #tpu.dot_dimension_numbers<[1], [0], [0], [1], [0, 0, 1, 1], [], []>} : vector<8x128xbf16>, vector<128x128xbf16>, vector<8x128xf32> -> vector<8x128xf32>
    %33 = arith.addf %30, %32 : vector<8x128xf32>
    %c0_7 = arith.constant 0 : index
    %c0_8 = arith.constant 0 : index
    %34 = vector.load %arg5[%c0_7, %c0_8] : memref<8x128xf32, #tpu.memory_space<vmem>>, vector<8x128xf32>
    tpu.vector_store %arg5[%c0_7, %c0_8], %33 {strides = array<i32>} : memref<8x128xf32, #tpu.memory_space<vmem>>, vector<8x128xf32>,
    %c0_i32_9 = arith.constant 0 : i32
    %35 = arith.cmpi eq, %arg1, %c0_i32_9 : i32
    %36 = arith.extui %35 : i1 to i32
    %cst_10 = arith.constant 2.500000e-01 : f32
    %c0_i32_11 = arith.constant 0 : i32
    %37 = arith.cmpi ne, %36, %c0_i32_11 : i32
    scf.if %37 {
      %c0_12 = arith.constant 0 : index
      %c0_13 = arith.constant 0 : index
      %38 = vector.load %arg5[%c0_12, %c0_13] : memref<8x128xf32, #tpu.memory_space<vmem>>, vector<8x128xf32>
      %39 = vector.broadcast %cst_10 : f32 to vector<8x128xf32>
      %40 = arith.mulf %38, %39 : vector<8x128xf32>
      %c0_14 = arith.constant 0 : index
      %c0_15 = arith.constant 0 : index
      %41 = vector.load %arg4[%c0_14, %c0_15] : memref<8x128xf32, #tpu.memory_space<vmem>>, vector<8x128xf32>
      tpu.vector_store %arg4[%c0_14, %c0_15], %40 {strides = array<i32>} : memref<8x128xf32, #tpu.memory_space<vmem>>, vector<8x128xf32>,
    } else {
    }
    return
  }
  func.func @transform_0(%arg0: i32, %arg1: i32) -> (i32, i32) {
    %c0_i32 = arith.constant 0 : i32
    %c0_i32_0 = arith.constant 0 : i32
    return %arg0, %c0_i32 : i32, i32
  }
  func.func @transform_1(%arg0: i32, %arg1: i32) -> (i32, i32) {
    %c0_i32 = arith.constant 0 : i32
    %c0_i32_0 = arith.constant 0 : i32
    %c0_i32_1 = arith.constant 0 : i32
    return %c0_i32, %c0_i32_0 : i32, i32
  }
  func.func @transform_2(%arg0: i32, %arg1: i32) -> (i32, i32) {
    %c0_i32 = arith.constant 0 : i32
    %c0_i32_0 = arith.constant 0 : i32
    return %arg0, %c0_i32 : i32, i32
  }
}

</mosaic_0001>

<llo_original>
// kernel: tpu_custom_call.1
$region0: #{tpu_custom_call.1}
  #allocation0 [shape = 'u32[]', space=smem, size = 0x4, offset = 0x4, fixed_abs, tag = 'smem constant byte address 0x4 - core index']
  #allocation1 [shape = 'u32[144,128]{1,0:T(1,128)}', space=vmem, size = 0x12000, scoped, tag = 'internal scratch']
  #allocation2 [shape = 'f32[8,128]{1,0:T(8,128)}', space=vmem, size = 0x1000, scoped, tag = 'scratch operand']
  %s0 = inlined_call_operand.vmem [shape: s32[8,4], index: 0, kind: input, shape index: {}]
  %s1 = inlined_call_operand.hbm [shape: bf16[128,128], index: 1, kind: input, shape index: {}]
  %s2 = inlined_call_operand.hbm [shape: f32[8,128], index: 2, kind: output, shape index: {}]
  %s3 = sld [smem:[#allocation0]]
  $region30: #{tpu_custom_call.1} parent=0
    _
  %s5 = ssub.s32 1, %s3
  %s6 = scalar_select 0, %s5, %s3
  $region1: #{tpu_custom_call.1} parent=0
    #allocation3 [shape = 'u8[32768]{0}', space=vmem, size = 0x8000, scoped, tag = 'input window, operand 1, single buffered']
    #allocation4 [shape = 's32[1]{0}', space=sflag, size = 0x4, scoped, tag = 'scoped memory for tpu_custom_call.1']
    #allocation5 [shape = 's32[1]{0}', space=sflag, size = 0x4, scoped, tag = 'scoped memory for tpu_custom_call.1']
    #allocation6 [shape = 'u8[4096]{0}', space=vmem, size = 0x1000, scoped, tag = 'output window, operand 0, single buffered']
    %7 = vsyncpa [#allocation4], 0
    %8 = vsyncpa [#allocation5], 0
    // Predicated region
    $region2: #{tpu_custom_call.1} parent=1 // pred_check
      _
    $region3: #{tpu_custom_call.1} parent=1 // pred_check_branch
      %10 = sbr.rel (0) target = $region5
    $region4: #{tpu_custom_call.1} parent=1 // pred_region
      _
    $region5: #{tpu_custom_call.1} parent=1 // pred_fallthru
      _
    // Predicated region
    $region6: #{tpu_custom_call.1} parent=1 // pred_check
      _
    $region7: #{tpu_custom_call.1} parent=1 // pred_check_branch
      %12 = sbr.rel (0) target = $region9
    $region8: #{tpu_custom_call.1} parent=1 // pred_region
      %s14 = ssub.s32 1024, 1024
      %15 = vsyncadd [#allocation4], %s14
      %s16 = sshll.u32 [#allocation3], 4
      %s17 = int_to_ptr.vmem [resolvable:$true] %s16
      %22 = dma.hbm_to_vmem [thread:$0]  %s1, 1024, %s17, [#allocation4], 64, 64, 4
    $region9: #{tpu_custom_call.1} parent=1 // pred_fallthru
      _
    // Predicated region
    $region10: #{tpu_custom_call.1} parent=1 // pred_check
      _
    $region11: #{tpu_custom_call.1} parent=1 // pred_check_branch
      %24 = sbr.rel (0) target = $region13
    $region12: #{tpu_custom_call.1} parent=1 // pred_region
      %25 = dma.done [#allocation4], 1024
    $region13: #{tpu_custom_call.1} parent=1 // pred_fallthru
      _
    %p27 = scmp.eq.s32.totalorder 0, 0
    // Predicated region
    $region14: #{tpu_custom_call.1} parent=1 // pred_check
      %p28 = pneg %p27
    $region15: #{tpu_custom_call.1} parent=1 // pred_check_branch
      %30 = sbr.rel (%p28) target = $region17
    $region16: #{tpu_custom_call.1} parent=1 // pred_region
      %31 = vst [vmem:[#allocation2] sm:$0xff] 0.0
    $region17: #{tpu_custom_call.1} parent=1 // pred_fallthru
      _
    %v32 = vld [vmem:[%s0] sm:$0xff]
    %v33 = vlaneseq
    %v34 = vand.u32 %v33, 127
    %s35 = smul.u32 0, 128
    %v36 = vstv %s35
    %v37 = vadd.s32 %v34, %v36
    %38 = vset.pattern.permute.xlu0 0
    %39 = vperm.xlu0 %38, %v32
    %v40 = vpop.permute.xlu0 %39
    %vm41 = vcmp.eq.s32.totalorder %v37, %v40
    %v42 = vsel %vm41, 1, 0
    %43 = vset.pattern.permute.xlu0 1
    %44 = vperm.xlu0 %43, %v32
    %v45 = vpop.permute.xlu0 %44
    %vm46 = vcmp.eq.s32.totalorder %v37, %v45
    %v47 = vsel %vm46, 1, 0
    %v48 = vadd.s32 %v42, %v47
    %49 = vset.pattern.permute.xlu0 2
    %50 = vperm.xlu0 %49, %v32
    %v51 = vpop.permute.xlu0 %50
    %vm52 = vcmp.eq.s32.totalorder %v37, %v51
    %v53 = vsel %vm52, 1, 0
    %v54 = vadd.s32 %v48, %v53
    %55 = vset.pattern.permute.xlu0 3
    %56 = vperm.xlu0 %55, %v32
    %v57 = vpop.permute.xlu0 %56
    %vm58 = vcmp.eq.s32.totalorder %v37, %v57
    %v59 = vsel %vm58, 1, 0
    %v60 = vadd.s32 %v54, %v59
    %v61 = vcvt.s32.f32 %v60
    %v62 = vpack.c.bf16 %v61, %v61
    %v63 = vld [vmem:[#allocation2] sm:$0xff]
    %v64 = vld [vmem:[#allocation3] sm:$0xf]
    %v65 = vld [vmem:[#allocation3 + $0x4] sm:$0xf]
    %v66 = vld [vmem:[#allocation3 + $0x8] sm:$0xf]
    %v67 = vld [vmem:[#allocation3 + $0xc] sm:$0xf]
    %v68 = vld [vmem:[#allocation3 + $0x10] sm:$0xf]
    %v69 = vld [vmem:[#allocation3 + $0x14] sm:$0xf]
    %v70 = vld [vmem:[#allocation3 + $0x18] sm:$0xf]
    %v71 = vld [vmem:[#allocation3 + $0x1c] sm:$0xf]
    %v72 = vld [vmem:[#allocation3 + $0x20] sm:$0xf]
    %v73 = vld [vmem:[#allocation3 + $0x24] sm:$0xf]
    %v74 = vld [vmem:[#allocation3 + $0x28] sm:$0xf]
    %v75 = vld [vmem:[#allocation3 + $0x2c] sm:$0xf]
    %v76 = vld [vmem:[#allocation3 + $0x30] sm:$0xf]
    %v77 = vld [vmem:[#allocation3 + $0x34] sm:$0xf]
    %v78 = vld [vmem:[#allocation3 + $0x38] sm:$0xf]
    %v79 = vld [vmem:[#allocation3 + $0x3c] sm:$0xf]
    %v96 = vunpack.c.l.b16 %v64
    %v97 = vunpack.c.l.b16 %v65
    %v98 = vunpack.c.l.b16 %v66
    %v99 = vunpack.c.l.b16 %v67
    %v100 = vunpack.c.l.b16 %v68
    %v101 = vunpack.c.l.b16 %v69
    %v102 = vunpack.c.l.b16 %v70
    %v103 = vunpack.c.l.b16 %v71
    %v104 = vunpack.c.l.b16 %v72
    %v105 = vunpack.c.l.b16 %v73
    %v106 = vunpack.c.l.b16 %v74
    %v107 = vunpack.c.l.b16 %v75
    %v108 = vunpack.c.l.b16 %v76
    %v109 = vunpack.c.l.b16 %v77
    %v110 = vunpack.c.l.b16 %v78
    %v111 = vunpack.c.l.b16 %v79
    %v112 = vpack.c.b16 %v97, %v96
    %v113 = vpack.c.b16 %v99, %v98
    %v114 = vpack.c.b16 %v101, %v100
    %v115 = vpack.c.b16 %v103, %v102
    %v116 = vpack.c.b16 %v105, %v104
    %v117 = vpack.c.b16 %v107, %v106
    %v118 = vpack.c.b16 %v109, %v108
    %v119 = vpack.c.b16 %v111, %v110
    %128 = vmatprep.subr.bf16.mxu0 0
    %129 = vmatpush1.bf16.msra.mxu0 %v119
    %130 = vmatprep.subr.bf16.mxu0 0
    %131 = vmatpush1.bf16.msra.mxu0 %v118
    %132 = vmatprep.subr.bf16.mxu0 0
    %133 = vmatpush1.bf16.msra.mxu0 %v117
    %134 = vmatprep.subr.bf16.mxu0 0
    %135 = vmatpush1.bf16.msra.mxu0 %v116
    %136 = vmatprep.subr.bf16.mxu0 0
    %137 = vmatpush1.bf16.msra.mxu0 %v115
    %138 = vmatprep.subr.bf16.mxu0 0
    %139 = vmatpush1.bf16.msra.mxu0 %v114
    %140 = vmatprep.subr.bf16.mxu0 0
    %141 = vmatpush1.bf16.msra.mxu0 %v113
    %142 = vmatprep.subr.bf16.mxu0 0
    %143 = vmatpush1.bf16.msra.mxu0 %v112
    %144 = vmatprep.subr.bf16.mxu0 0
    %145 = vmatpush2.bf16.msra.mxu0 0
    %146 = vmatprep.subr.bf16.mxu0 0
    %147 = vmatpush2.bf16.msra.mxu0 0
    %148 = vmatprep.subr.bf16.mxu0 0
    %149 = vmatpush2.bf16.msra.mxu0 0
    %150 = vmatprep.subr.bf16.mxu0 0
    %151 = vmatpush2.bf16.msra.mxu0 0
    %152 = vmatprep.subr.bf16.mxu0 0
    %153 = vmatpush2.bf16.msra.mxu0 0
    %154 = vmatprep.subr.bf16.mxu0 0
    %155 = vmatpush2.bf16.msra.mxu0 0
    %156 = vmatprep.subr.bf16.mxu0 0
    %157 = vmatpush2.bf16.msra.mxu0 0
    %158 = vmatprep.subr.bf16.mxu0 0
    %159 = vmatpush2.bf16.msra.mxu0 0
    %160 = vmatprep.mubr.bf16.mxu0 0
    %161 = vmatmul.mubr.bf16.gmra.mxu0 %v62
    %v162 = vpop.f32.mrf.mxu0
    %v163 = vadd.f32 0.0, %v162
    %v164 = vpop.f32.mrf.mxu0
    %v165 = vpop.f32.mrf.mxu0
    %v166 = vpop.f32.mrf.mxu0
    %167 = vdwg.mxu0
    %v168 = vadd.f32 %v63, %v163
    %169 = vst [vmem:[#allocation2] sm:$0xff] %v168
    // Predicated region
    $region18: #{tpu_custom_call.1} parent=1 // pred_check
      %p170 = pneg %p27
    $region19: #{tpu_custom_call.1} parent=1 // pred_check_branch
      %172 = sbr.rel (%p170) target = $region21
    $region20: #{tpu_custom_call.1} parent=1 // pred_region
      %v173 = vld [vmem:[#allocation2] sm:$0xff]
      %v174 = vmul.f32 %v173, 0.25
      %175 = vst [vmem:[#allocation6] sm:$0xff] %v174
    $region21: #{tpu_custom_call.1} parent=1 // pred_fallthru
      _
    // Predicated region
    $region22: #{tpu_custom_call.1} parent=1 // pred_check
      _
    $region23: #{tpu_custom_call.1} parent=1 // pred_check_branch
      %177 = sbr.rel (0) target = $region25
    $region24: #{tpu_custom_call.1} parent=1 // pred_region
      %s179 = ssub.s32 128, 128
      %180 = vsyncadd [#allocation5], %s179
      %s182 = sshll.u32 [#allocation6], 4
      %s183 = int_to_ptr.vmem [resolvable:$true] %s182
      %185 = dma.vmem_to_hbm [thread:$0]  %s183, 128, %s2, [#allocation5]
    $region25: #{tpu_custom_call.1} parent=1 // pred_fallthru
      _
    // Predicated region
    $region26: #{tpu_custom_call.1} parent=1 // pred_check
      _
    $region27: #{tpu_custom_call.1} parent=1 // pred_check_branch
      %187 = sbr.rel (0) target = $region29
    $region28: #{tpu_custom_call.1} parent=1 // pred_region
      %188 = dma.done [#allocation5], 128
    $region29: #{tpu_custom_call.1} parent=1 // pred_fallthru
      _
    %189 = vsyncpa [#allocation4], 1
    %190 = vsyncpa [#allocation5], 1

</llo_original>
